<compile_context>
chip_gen: v6e
topology: v6e:2x2x1
jax: 0.10.0
libtpu: 0.0.40
codegen_flags: <defaults>
</compile_context>

<pallas_src>
import jax
import jax.numpy as jnp
from jax.experimental import pallas as pl
from jax.experimental.pallas import tpu as pltpu


def firstnet_kernel(x_ref, w_ref, b_ref, out_ref):
    """Fused Linear+GRU forward, returning the final hidden state.

    x_ref:  (T*Bp, Dp)  time-major input, batch padded to Bp (sublane tile),
                        features zero-padded to Dp (multiple of 8).
    w_ref:  (Dp+H, 3H)  rows [:Dp]  = W_fused = W_lin @ W_ih (zero-padded rows),
                        rows [Dp:]  = W_hh.
    b_ref:  (2, 3H)     row 0 = fused gi bias (b_lin@W_ih + b_ih + [bhh_r, bhh_z, 0]),
                        row 1 = b_hh (only the n-gate lanes are used).
    out_ref:(Bp, H)     final hidden state (padded rows are garbage, dropped in wrapper).
    """
    TBp, Dp = x_ref.shape
    Bp, H = out_ref.shape
    T = TBp // Bp

    # Hoist all weight/bias loads and broadcasts out of the unrolled time loop.
    wf = w_ref[:Dp, :]                                        # (Dp, 3H) 8-aligned slice
    whh = w_ref[Dp:, :]                                       # (H, 3H)  8-aligned slice
    bf = b_ref[0:1, :]                                        # (1, 3H)
    bhh_n = jnp.broadcast_to(b_ref[1:2, 2 * H:], (Bp, H))     # (Bp, H), built once

    # Single off-recurrence MXU matmul: input projection for ALL timesteps.
    gi_all = jnp.dot(x_ref[...], wf,
                     preferred_element_type=jnp.float32) + bf  # (T*Bp, 3H)

    h = jnp.zeros((Bp, H), dtype=jnp.float32)

    # T is small and static -> fully unrolled (traced once); every slice below
    # starts at a multiple of 8 sublanes.
    for t in range(T):
        gi = gi_all[t * Bp:(t + 1) * Bp, :]                   # (Bp, 3H)

        # Only the hidden-state projection sits on the serial recurrence chain.
        gh = jnp.dot(h, whh, preferred_element_type=jnp.float32)   # (Bp, 3H)

        # Merged r/z sigmoid over the first 2H lanes (bhh_r/z already folded
        # into bf in the wrapper); PyTorch gate order is (r, z, n).
        rz = jax.nn.sigmoid(gi[:, :2 * H] + gh[:, :2 * H])
        r = rz[:, :H]
        z = rz[:, H:]
        n = jnp.tanh(gi[:, 2 * H:] + r * (gh[:, 2 * H:] + bhh_n))
        h = n + z * (h - n)                                   # == (1-z)*n + z*h

    out_ref[...] = h.astype(out_ref.dtype)


def prepare_fused_params(params):
    """One-time (per parameter set) fusion & packing. Hoisted out of the
    per-call path: do NOT recompute this per forward."""
    D = params["wl"].shape[0]
    H = params["whh"].shape[0]
    Dp = ((D + 7) // 8) * 8                                   # pad contraction dim to sublane tile

    wf = params["wl"] @ params["wih"]                         # (D, 3H)
    wf_pad = jnp.zeros((Dp, 3 * H), jnp.float32).at[:D].set(wf)
    w_packed = jnp.concatenate([wf_pad, params["whh"]], axis=0)   # (Dp+H, 3H)

    bf = params["bl"] @ params["wih"] + params["bih"]         # (1, 3H)
    bhh = params["bhh"]                                       # (1, 3H)
    bf_fused = bf.at[:, :2 * H].add(bhh[:, :2 * H])           # fold r/z hidden bias
    b_packed = jnp.concatenate([bf_fused, bhh], axis=0)       # (2, 3H)

    return w_packed, b_packed


@jax.jit
def firstnet_forward(x, w_packed, b_packed):
    """x: (B, T, D) float32 (batch_first). Returns (B, 1, H) == hn.transpose(0, 1)."""
    B, T, D = x.shape
    H = b_packed.shape[1] // 3
    Dp = w_packed.shape[0] - H
    Bp = ((B + 7) // 8) * 8                                   # sublane-tile padded batch

    # Time-major, batch padded to Bp, features zero-padded to Dp, then flattened
    # so each timestep occupies an 8-aligned contiguous row block.
    x_tm = jnp.transpose(x, (1, 0, 2))                        # (T, B, D)
    x_pad = jnp.zeros((T, Bp, Dp), jnp.float32).at[:, :B, :D].set(x_tm)
    x_tb = x_pad.reshape(T * Bp, Dp)

    vmem = pl.BlockSpec(memory_space=pltpu.MemorySpace.VMEM)
    h_final = pl.pallas_call(
        firstnet_kernel,
        out_shape=jax.ShapeDtypeStruct((Bp, H), jnp.float32),
        in_specs=[vmem, vmem, vmem],
        out_specs=vmem,
    )(x_tb, w_packed, b_packed)

    # Drop padded batch rows (row-independent recurrence -> no contamination).
    return h_final[:B].reshape(B, 1, H)


def firstnet_reference(x, params):
    """Pure-JAX reference matching PyTorch semantics (eval-mode dropout)."""
    B, T, D = x.shape
    H = params["whh"].shape[0]
    rnn_in = jnp.einsum("btd,dr->btr", x, params["wl"]) + params["bl"]
    h = jnp.zeros((B, H), jnp.float32)
    for t in range(T):
        gi = rnn_in[:, t, :] @ params["wih"] + params["bih"]
        gh = h @ params["whh"] + params["bhh"]
        r = jax.nn.sigmoid(gi[:, :H] + gh[:, :H])
        z = jax.nn.sigmoid(gi[:, H:2 * H] + gh[:, H:2 * H])
        n = jnp.tanh(gi[:, 2 * H:] + r * gh[:, 2 * H:])
        h = (1.0 - z) * n + z * h
    return h.reshape(B, 1, H)


def init_params(key, input_dim, rnn_dim, state_dim):
    """Deterministic init mimicking PyTorch default uniform(-1/sqrt(fan), ...)."""
    ks = jax.random.split(key, 7)
    kl = 1.0 / jnp.sqrt(jnp.float32(input_dim))
    kg = 1.0 / jnp.sqrt(jnp.float32(state_dim))
    u = lambda k, shape, lim: jax.random.uniform(
        k, shape, jnp.float32, minval=-lim, maxval=lim)
    return {
        # Linear: stored as (D, R) for x @ W
        "wl": u(ks[0], (input_dim, rnn_dim), kl),
        "bl": u(ks[1], (1, rnn_dim), kl),
        # GRU: W_ih (R, 3H), W_hh (H, 3H), gate order [r, z, n]
        "wih": u(ks[2], (rnn_dim, 3 * state_dim), kg),
        "whh": u(ks[3], (state_dim, 3 * state_dim), kg),
        "bih": u(ks[4], (1, 3 * state_dim), kg),
        "bhh": u(ks[5], (1, 3 * state_dim), kg),
    }


if __name__ == "__main__":
    # Shapes implied by the module script: x = torch.randn(3, 5, 10)
    B, T, input_dim = 3, 5, 10
    rnn_dim, state_dim = 32, 16

    key = jax.random.PRNGKey(0)
    kx, kp = jax.random.split(key)
    x = jax.random.normal(kx, (B, T, input_dim), dtype=jnp.float32)
    params = init_params(kp, input_dim, rnn_dim, state_dim)

    # One-time weight fusion/packing (hoisted out of the per-call path).
    w_packed, b_packed = prepare_fused_params(params)
    w_packed, b_packed = jax.block_until_ready((w_packed, b_packed))

    out = firstnet_forward(x, w_packed, b_packed)
    out = jax.block_until_ready(out)

    ref = firstnet_reference(x, params)
    assert out.shape == (B, 1, state_dim), out.shape
    assert jnp.allclose(out, ref, atol=1e-5, rtol=1e-5), "mismatch vs reference"

    print("KERNEL_OK")
</pallas_src>

<mosaic_0001>
module attributes {stable_mosaic.version = 11 : i64} {
  func.func @firstnet_kernel(%arg0: memref<40x16xf32, #tpu.memory_space<vmem>>, %arg1: memref<32x48xf32, #tpu.memory_space<vmem>>, %arg2: memref<2x48xf32, #tpu.memory_space<vmem>>, %arg3: memref<8x16xf32, #tpu.memory_space<vmem>>) attributes {dimension_semantics = [], scalar_prefetch = 0 : i64, scratch_operands = 0 : i64, tpu.core_type = #tpu.core_type<tc>} {
    %c0 = arith.constant 0 : index
    %c0_0 = arith.constant 0 : index
    %0 = vector.load %arg1[%c0, %c0_0] : memref<32x48xf32, #tpu.memory_space<vmem>>, vector<16x48xf32>
    %c16 = arith.constant 16 : index
    %c0_1 = arith.constant 0 : index
    %1 = vector.load %arg1[%c16, %c0_1] : memref<32x48xf32, #tpu.memory_space<vmem>>, vector<16x48xf32>
    %c0_2 = arith.constant 0 : index
    %c0_3 = arith.constant 0 : index
    %2 = vector.load %arg2[%c0_2, %c0_3] : memref<2x48xf32, #tpu.memory_space<vmem>>, vector<1x48xf32>
    %c1 = arith.constant 1 : index
    %c32 = arith.constant 32 : index
    %3 = vector.load %arg2[%c1, %c32] : memref<2x48xf32, #tpu.memory_space<vmem>>, vector<1x16xf32>
    %4 = vector.shape_cast %3 : vector<1x16xf32> to vector<1x16xf32>
    %5 = vector.broadcast %4 : vector<1x16xf32> to vector<8x16xf32>
    %c0_4 = arith.constant 0 : index
    %c0_5 = arith.constant 0 : index
    %6 = vector.load %arg0[%c0_4, %c0_5] : memref<40x16xf32, #tpu.memory_space<vmem>>, vector<40x16xf32>
    %cst = arith.constant dense<0.000000e+00> : vector<40x48xf32>
    %7 = tpu.matmul %6, %0, %cst {dimension_numbers = #tpu.dot_dimension_numbers<[1], [0], [0], [1], [0, 0, 1, 1], [], []>} : vector<40x16xf32>, vector<16x48xf32>, vector<40x48xf32> -> vector<40x48xf32>
    %8 = vector.broadcast %2 : vector<1x48xf32> to vector<40x48xf32>
    %9 = arith.addf %7, %8 : vector<40x48xf32>
    %cst_6 = arith.constant 0.000000e+00 : f32
    %10 = vector.broadcast %cst_6 : f32 to vector<8x16xf32>
    %11 = vector.extract_strided_slice %9 {offsets = [0, 0], sizes = [8, 48], strides = [1, 1]} : vector<40x48xf32> to vector<8x48xf32>
    %cst_7 = arith.constant dense<0.000000e+00> : vector<8x48xf32>
    %12 = tpu.matmul %10, %1, %cst_7 {dimension_numbers = #tpu.dot_dimension_numbers<[1], [0], [0], [1], [0, 0, 1, 1], [], []>} : vector<8x16xf32>, vector<16x48xf32>, vector<8x48xf32> -> vector<8x48xf32>
    %13 = vector.extract_strided_slice %11 {offsets = [0, 0], sizes = [8, 32], strides = [1, 1]} : vector<8x48xf32> to vector<8x32xf32>
    %14 = vector.extract_strided_slice %12 {offsets = [0, 0], sizes = [8, 32], strides = [1, 1]} : vector<8x48xf32> to vector<8x32xf32>
    %15 = arith.addf %13, %14 : vector<8x32xf32>
    %16 = arith.negf %15 : vector<8x32xf32>
    %17 = math.exp %16 : vector<8x32xf32>
    %cst_8 = arith.constant 1.000000e+00 : f32
    %18 = vector.broadcast %cst_8 : f32 to vector<8x32xf32>
    %19 = arith.addf %18, %17 : vector<8x32xf32>
    %20 = arith.divf %18, %19 : vector<8x32xf32>
    %21 = vector.extract_strided_slice %20 {offsets = [0, 0], sizes = [8, 16], strides = [1, 1]} : vector<8x32xf32> to vector<8x16xf32>
    %22 = vector.extract_strided_slice %20 {offsets = [0, 16], sizes = [8, 16], strides = [1, 1]} : vector<8x32xf32> to vector<8x16xf32>
    %23 = vector.extract_strided_slice %11 {offsets = [0, 32], sizes = [8, 16], strides = [1, 1]} : vector<8x48xf32> to vector<8x16xf32>
    %24 = vector.extract_strided_slice %12 {offsets = [0, 32], sizes = [8, 16], strides = [1, 1]} : vector<8x48xf32> to vector<8x16xf32>
    %25 = arith.addf %24, %5 : vector<8x16xf32>
    %26 = arith.mulf %21, %25 : vector<8x16xf32>
    %27 = arith.addf %23, %26 : vector<8x16xf32>
    %28 = math.tanh %27 : vector<8x16xf32>
    %29 = arith.subf %10, %28 : vector<8x16xf32>
    %30 = arith.mulf %22, %29 : vector<8x16xf32>
    %31 = arith.addf %28, %30 : vector<8x16xf32>
    %32 = vector.extract_strided_slice %9 {offsets = [8, 0], sizes = [8, 48], strides = [1, 1]} : vector<40x48xf32> to vector<8x48xf32>
    %cst_9 = arith.constant dense<0.000000e+00> : vector<8x48xf32>
    %33 = tpu.matmul %31, %1, %cst_9 {dimension_numbers = #tpu.dot_dimension_numbers<[1], [0], [0], [1], [0, 0, 1, 1], [], []>} : vector<8x16xf32>, vector<16x48xf32>, vector<8x48xf32> -> vector<8x48xf32>
    %34 = vector.extract_strided_slice %32 {offsets = [0, 0], sizes = [8, 32], strides = [1, 1]} : vector<8x48xf32> to vector<8x32xf32>
    %35 = vector.extract_strided_slice %33 {offsets = [0, 0], sizes = [8, 32], strides = [1, 1]} : vector<8x48xf32> to vector<8x32xf32>
    %36 = arith.addf %34, %35 : vector<8x32xf32>
    %37 = arith.negf %36 : vector<8x32xf32>
    %38 = math.exp %37 : vector<8x32xf32>
    %cst_10 = arith.constant 1.000000e+00 : f32
    %39 = vector.broadcast %cst_10 : f32 to vector<8x32xf32>
    %40 = arith.addf %39, %38 : vector<8x32xf32>
    %41 = arith.divf %39, %40 : vector<8x32xf32>
    %42 = vector.extract_strided_slice %41 {offsets = [0, 0], sizes = [8, 16], strides = [1, 1]} : vector<8x32xf32> to vector<8x16xf32>
    %43 = vector.extract_strided_slice %41 {offsets = [0, 16], sizes = [8, 16], strides = [1, 1]} : vector<8x32xf32> to vector<8x16xf32>
    %44 = vector.extract_strided_slice %32 {offsets = [0, 32], sizes = [8, 16], strides = [1, 1]} : vector<8x48xf32> to vector<8x16xf32>
    %45 = vector.extract_strided_slice %33 {offsets = [0, 32], sizes = [8, 16], strides = [1, 1]} : vector<8x48xf32> to vector<8x16xf32>
    %46 = arith.addf %45, %5 : vector<8x16xf32>
    %47 = arith.mulf %42, %46 : vector<8x16xf32>
    %48 = arith.addf %44, %47 : vector<8x16xf32>
    %49 = math.tanh %48 : vector<8x16xf32>
    %50 = arith.subf %31, %49 : vector<8x16xf32>
    %51 = arith.mulf %43, %50 : vector<8x16xf32>
    %52 = arith.addf %49, %51 : vector<8x16xf32>
    %53 = vector.extract_strided_slice %9 {offsets = [16, 0], sizes = [8, 48], strides = [1, 1]} : vector<40x48xf32> to vector<8x48xf32>
    %cst_11 = arith.constant dense<0.000000e+00> : vector<8x48xf32>
    %54 = tpu.matmul %52, %1, %cst_11 {dimension_numbers = #tpu.dot_dimension_numbers<[1], [0], [0], [1], [0, 0, 1, 1], [], []>} : vector<8x16xf32>, vector<16x48xf32>, vector<8x48xf32> -> vector<8x48xf32>
    %55 = vector.extract_strided_slice %53 {offsets = [0, 0], sizes = [8, 32], strides = [1, 1]} : vector<8x48xf32> to vector<8x32xf32>
    %56 = vector.extract_strided_slice %54 {offsets = [0, 0], sizes = [8, 32], strides = [1, 1]} : vector<8x48xf32> to vector<8x32xf32>
    %57 = arith.addf %55, %56 : vector<8x32xf32>
    %58 = arith.negf %57 : vector<8x32xf32>
    %59 = math.exp %58 : vector<8x32xf32>
    %cst_12 = arith.constant 1.000000e+00 : f32
    %60 = vector.broadcast %cst_12 : f32 to vector<8x32xf32>
    %61 = arith.addf %60, %59 : vector<8x32xf32>
    %62 = arith.divf %60, %61 : vector<8x32xf32>
    %63 = vector.extract_strided_slice %62 {offsets = [0, 0], sizes = [8, 16], strides = [1, 1]} : vector<8x32xf32> to vector<8x16xf32>
    %64 = vector.extract_strided_slice %62 {offsets = [0, 16], sizes = [8, 16], strides = [1, 1]} : vector<8x32xf32> to vector<8x16xf32>
    %65 = vector.extract_strided_slice %53 {offsets = [0, 32], sizes = [8, 16], strides = [1, 1]} : vector<8x48xf32> to vector<8x16xf32>
    %66 = vector.extract_strided_slice %54 {offsets = [0, 32], sizes = [8, 16], strides = [1, 1]} : vector<8x48xf32> to vector<8x16xf32>
    %67 = arith.addf %66, %5 : vector<8x16xf32>
    %68 = arith.mulf %63, %67 : vector<8x16xf32>
    %69 = arith.addf %65, %68 : vector<8x16xf32>
    %70 = math.tanh %69 : vector<8x16xf32>
    %71 = arith.subf %52, %70 : vector<8x16xf32>
    %72 = arith.mulf %64, %71 : vector<8x16xf32>
    %73 = arith.addf %70, %72 : vector<8x16xf32>
    %74 = vector.extract_strided_slice %9 {offsets = [24, 0], sizes = [8, 48], strides = [1, 1]} : vector<40x48xf32> to vector<8x48xf32>
    %cst_13 = arith.constant dense<0.000000e+00> : vector<8x48xf32>
    %75 = tpu.matmul %73, %1, %cst_13 {dimension_numbers = #tpu.dot_dimension_numbers<[1], [0], [0], [1], [0, 0, 1, 1], [], []>} : vector<8x16xf32>, vector<16x48xf32>, vector<8x48xf32> -> vector<8x48xf32>
    %76 = vector.extract_strided_slice %74 {offsets = [0, 0], sizes = [8, 32], strides = [1, 1]} : vector<8x48xf32> to vector<8x32xf32>
    %77 = vector.extract_strided_slice %75 {offsets = [0, 0], sizes = [8, 32], strides = [1, 1]} : vector<8x48xf32> to vector<8x32xf32>
    %78 = arith.addf %76, %77 : vector<8x32xf32>
    %79 = arith.negf %78 : vector<8x32xf32>
    %80 = math.exp %79 : vector<8x32xf32>
    %cst_14 = arith.constant 1.000000e+00 : f32
    %81 = vector.broadcast %cst_14 : f32 to vector<8x32xf32>
    %82 = arith.addf %81, %80 : vector<8x32xf32>
    %83 = arith.divf %81, %82 : vector<8x32xf32>
    %84 = vector.extract_strided_slice %83 {offsets = [0, 0], sizes = [8, 16], strides = [1, 1]} : vector<8x32xf32> to vector<8x16xf32>
    %85 = vector.extract_strided_slice %83 {offsets = [0, 16], sizes = [8, 16], strides = [1, 1]} : vector<8x32xf32> to vector<8x16xf32>
    %86 = vector.extract_strided_slice %74 {offsets = [0, 32], sizes = [8, 16], strides = [1, 1]} : vector<8x48xf32> to vector<8x16xf32>
    %87 = vector.extract_strided_slice %75 {offsets = [0, 32], sizes = [8, 16], strides = [1, 1]} : vector<8x48xf32> to vector<8x16xf32>
    %88 = arith.addf %87, %5 : vector<8x16xf32>
    %89 = arith.mulf %84, %88 : vector<8x16xf32>
    %90 = arith.addf %86, %89 : vector<8x16xf32>
    %91 = math.tanh %90 : vector<8x16xf32>
    %92 = arith.subf %73, %91 : vector<8x16xf32>
    %93 = arith.mulf %85, %92 : vector<8x16xf32>
    %94 = arith.addf %91, %93 : vector<8x16xf32>
    %95 = vector.extract_strided_slice %9 {offsets = [32, 0], sizes = [8, 48], strides = [1, 1]} : vector<40x48xf32> to vector<8x48xf32>
    %cst_15 = arith.constant dense<0.000000e+00> : vector<8x48xf32>
    %96 = tpu.matmul %94, %1, %cst_15 {dimension_numbers = #tpu.dot_dimension_numbers<[1], [0], [0], [1], [0, 0, 1, 1], [], []>} : vector<8x16xf32>, vector<16x48xf32>, vector<8x48xf32> -> vector<8x48xf32>
    %97 = vector.extract_strided_slice %95 {offsets = [0, 0], sizes = [8, 32], strides = [1, 1]} : vector<8x48xf32> to vector<8x32xf32>
    %98 = vector.extract_strided_slice %96 {offsets = [0, 0], sizes = [8, 32], strides = [1, 1]} : vector<8x48xf32> to vector<8x32xf32>
    %99 = arith.addf %97, %98 : vector<8x32xf32>
    %100 = arith.negf %99 : vector<8x32xf32>
    %101 = math.exp %100 : vector<8x32xf32>
    %cst_16 = arith.constant 1.000000e+00 : f32
    %102 = vector.broadcast %cst_16 : f32 to vector<8x32xf32>
    %103 = arith.addf %102, %101 : vector<8x32xf32>
    %104 = arith.divf %102, %103 : vector<8x32xf32>
    %105 = vector.extract_strided_slice %104 {offsets = [0, 0], sizes = [8, 16], strides = [1, 1]} : vector<8x32xf32> to vector<8x16xf32>
    %106 = vector.extract_strided_slice %104 {offsets = [0, 16], sizes = [8, 16], strides = [1, 1]} : vector<8x32xf32> to vector<8x16xf32>
    %107 = vector.extract_strided_slice %95 {offsets = [0, 32], sizes = [8, 16], strides = [1, 1]} : vector<8x48xf32> to vector<8x16xf32>
    %108 = vector.extract_strided_slice %96 {offsets = [0, 32], sizes = [8, 16], strides = [1, 1]} : vector<8x48xf32> to vector<8x16xf32>
    %109 = arith.addf %108, %5 : vector<8x16xf32>
    %110 = arith.mulf %105, %109 : vector<8x16xf32>
    %111 = arith.addf %107, %110 : vector<8x16xf32>
    %112 = math.tanh %111 : vector<8x16xf32>
    %113 = arith.subf %94, %112 : vector<8x16xf32>
    %114 = arith.mulf %106, %113 : vector<8x16xf32>
    %115 = arith.addf %112, %114 : vector<8x16xf32>
    %c0_17 = arith.constant 0 : index
    %c0_18 = arith.constant 0 : index
    %116 = vector.load %arg3[%c0_17, %c0_18] : memref<8x16xf32, #tpu.memory_space<vmem>>, vector<8x16xf32>
    tpu.vector_store %arg3[%c0_17, %c0_18], %115 {strides = array<i32>} : memref<8x16xf32, #tpu.memory_space<vmem>>, vector<8x16xf32>,
    return
  }
}

</mosaic_0001>

<llo_original>
// kernel: firstnet_forward.1
$region0: #{firstnet_forward.1}
  #allocation0 [shape = 'u32[]', space=smem, size = 0x4, offset = 0x4, fixed_abs, tag = 'smem constant byte address 0x4 - core index']
  #allocation1 [shape = 'u32[144,128]{1,0:T(1,128)}', space=vmem, size = 0x12000, scoped, tag = 'internal scratch']
  %s0 = inlined_call_operand.vmem [shape: f32[40,16], index: 0, kind: input, shape index: {}]
  %s1 = inlined_call_operand.vmem [shape: f32[32,48], index: 1, kind: input, shape index: {}]
  %s2 = inlined_call_operand.vmem [shape: f32[2,48], index: 2, kind: input, shape index: {}]
  %s3 = inlined_call_operand.vmem [shape: f32[8,16], index: 3, kind: output, shape index: {}]
  %s4 = sld [smem:[#allocation0]]
  $region22: #{firstnet_forward.1} parent=0
    _
  %s6 = ssub.s32 1, %s4
  %s7 = scalar_select 0, %s6, %s4
  // Predicated region
  $region2: #{firstnet_forward.1} parent=0 // pred_check
    _
  $region3: #{firstnet_forward.1} parent=0 // pred_check_branch
    %9 = sbr.rel (0) target = $region5
  $region4: #{firstnet_forward.1} parent=0 // pred_region
    _
  $region5: #{firstnet_forward.1} parent=0 // pred_fallthru
    _
  // Predicated region
  $region6: #{firstnet_forward.1} parent=0 // pred_check
    _
  $region7: #{firstnet_forward.1} parent=0 // pred_check_branch
    %11 = sbr.rel (0) target = $region9
  $region8: #{firstnet_forward.1} parent=0 // pred_region
    _
  $region9: #{firstnet_forward.1} parent=0 // pred_fallthru
    _
  // Predicated region
  $region10: #{firstnet_forward.1} parent=0 // pred_check
    _
  $region11: #{firstnet_forward.1} parent=0 // pred_check_branch
    %13 = sbr.rel (0) target = $region13
  $region12: #{firstnet_forward.1} parent=0 // pred_region
    _
  $region13: #{firstnet_forward.1} parent=0 // pred_fallthru
    _
  %v14 = vld [vmem:[%s1] sm:$0xff]
  %v15 = vld [vmem:[%s1 + $0x8] sm:$0xff]
  %v16 = vld [vmem:[%s1 + $0x10] sm:$0xff]
  %v17 = vld [vmem:[%s1 + $0x18] sm:$0xff]
  %v18 = vld [vmem:[%s2] sm:$0x1]
  %v19 = vld [vmem:[%s2 + $0x1] sm:$0x1]
  %v20 = vlaneseq
  %v21 = vshrl.u32 %v20, 7
  %v22 = vsub.s32 0, %v21
  %v23 = vrot.slane %v19, %v22
  %v24 = vld [vmem:[%s0] sm:$0xff]
  %v25 = vld [vmem:[%s0 + $0x8] sm:$0xff]
  %v26 = vld [vmem:[%s0 + $0x10] sm:$0xff]
  %v27 = vld [vmem:[%s0 + $0x18] sm:$0xff]
  %v28 = vld [vmem:[%s0 + $0x20] sm:$0xff]
  %v29 = vlaneseq
  %v30 = vshrl.u32 %v29, 7
  %v31 = vsub.s32 0, %v30
  %v32 = vrot.slane %v18, %v31
  %vm33 = vcmask 130048
  %v35 = vsel %vm33, %v24, 0
  %v38 = vsel %vm33, %v25, 0
  %v41 = vsel %vm33, %v26, 0
  %v44 = vsel %vm33, %v27, 0
  %v47 = vsel %vm33, %v28, 0
  %49 = vmatprep.subr.mxu0 0.0
  %50 = vmatpush1.msra.mxu0 0.0
  %51 = vmatprep.subr.mxu0 0.0
  %52 = vmatpush1.msra.mxu0 0.0
  %53 = vmatprep.subr.mxu0 0.0
  %54 = vmatpush1.msra.mxu0 0.0
  %55 = vmatprep.subr.mxu0 0.0
  %56 = vmatpush1.msra.mxu0 0.0
  %57 = vmatprep.subr.mxu0 0.0
  %58 = vmatpush1.msra.mxu0 0.0
  %59 = vmatprep.subr.mxu0 0.0
  %60 = vmatpush1.msra.mxu0 0.0
  %61 = vmatprep.subr.mxu0 0.0
  %62 = vmatpush1.msra.mxu0 0.0
  %63 = vmatprep.subr.mxu0 0.0
  %64 = vmatpush1.msra.mxu0 0.0
  %65 = vmatprep.subr.mxu0 0.0
  %66 = vmatpush1.msra.mxu0 0.0
  %67 = vmatprep.subr.mxu0 0.0
  %68 = vmatpush1.msra.mxu0 0.0
  %69 = vmatprep.subr.mxu0 0.0
  %70 = vmatpush1.msra.mxu0 0.0
  %71 = vmatprep.subr.mxu0 0.0
  %72 = vmatpush1.msra.mxu0 0.0
  %73 = vmatprep.subr.mxu0 0.0
  %74 = vmatpush1.msra.mxu0 0.0
  %75 = vmatprep.subr.mxu0 0.0
  %76 = vmatpush1.msra.mxu0 0.0
  %77 = vmatprep.subr.mxu0 0.0
  %78 = vmatpush1.msra.mxu0 %v15
  %79 = vmatprep.subr.mxu0 0.0
  %80 = vmatpush1.msra.mxu0 %v14
  %81 = vmatprep.subr.mxu0 0.0
  %82 = vmatpush2.msra.mxu0 0.0
  %83 = vmatprep.subr.mxu0 0.0
  %84 = vmatpush2.msra.mxu0 0.0
  %85 = vmatprep.subr.mxu0 0.0
  %86 = vmatpush2.msra.mxu0 0.0
  %87 = vmatprep.subr.mxu0 0.0
  %88 = vmatpush2.msra.mxu0 0.0
  %89 = vmatprep.subr.mxu0 0.0
  %90 = vmatpush2.msra.mxu0 0.0
  %91 = vmatprep.subr.mxu0 0.0
  %92 = vmatpush2.msra.mxu0 0.0
  %93 = vmatprep.subr.mxu0 0.0
  %94 = vmatpush2.msra.mxu0 0.0
  %95 = vmatprep.subr.mxu0 0.0
  %96 = vmatpush2.msra.mxu0 0.0
  %97 = vmatprep.subr.mxu0 0.0
  %98 = vmatpush2.msra.mxu0 0.0
  %99 = vmatprep.subr.mxu0 0.0
  %100 = vmatpush2.msra.mxu0 0.0
  %101 = vmatprep.subr.mxu0 0.0
  %102 = vmatpush2.msra.mxu0 0.0
  %103 = vmatprep.subr.mxu0 0.0
  %104 = vmatpush2.msra.mxu0 0.0
  %105 = vmatprep.subr.mxu0 0.0
  %106 = vmatpush2.msra.mxu0 0.0
  %107 = vmatprep.subr.mxu0 0.0
  %108 = vmatpush2.msra.mxu0 0.0
  %109 = vmatprep.subr.mxu0 0.0
  %110 = vmatpush2.msra.mxu0 0.0
  %111 = vmatprep.subr.mxu0 0.0
  %112 = vmatpush2.msra.mxu0 0.0
  %113 = vmatprep.mubr.f32.mxu0 0.0
  %114 = vmatmul.mubr.f32.gmra.mxu0 %v35
  %v115 = vpop.f32.mrf.mxu0
  %v116 = vadd.f32 %v32, %v115
  %v117 = vpop.f32.mrf.mxu0
  %118 = vmatprep.mubr.f32.mxu0 0.0
  %119 = vmatmul.mubr.f32.gmra.mxu0 %v38
  %v120 = vpop.f32.mrf.mxu0
  %v121 = vadd.f32 %v32, %v120
  %v122 = vpop.f32.mrf.mxu0
  %123 = vmatprep.mubr.f32.mxu0 0.0
  %124 = vmatmul.mubr.f32.gmra.mxu0 %v41
  %v125 = vpop.f32.mrf.mxu0
  %v126 = vadd.f32 %v32, %v125
  %v127 = vpop.f32.mrf.mxu0
  %128 = vmatprep.mubr.f32.mxu0 0.0
  %129 = vmatmul.mubr.f32.gmra.mxu0 %v44
  %v130 = vpop.f32.mrf.mxu0
  %v131 = vadd.f32 %v32, %v130
  %v132 = vpop.f32.mrf.mxu0
  %133 = vmatprep.mubr.f32.mxu0 0.0
  %134 = vmatmul.mubr.f32.gmra.mxu0 %v47
  %v135 = vpop.f32.mrf.mxu0
  %v136 = vadd.f32 %v32, %v135
  %v137 = vpop.f32.mrf.mxu0
  %138 = vdwg.mxu0
  %v140 = vsel %vm33, 0.0, 0
  %142 = vmatprep.subr.mxu0 0.0
  %143 = vmatpush1.msra.mxu0 0.0
  %144 = vmatprep.subr.mxu0 0.0
  %145 = vmatpush1.msra.mxu0 0.0
  %146 = vmatprep.subr.mxu0 0.0
  %147 = vmatpush1.msra.mxu0 0.0
  %148 = vmatprep.subr.mxu0 0.0
  %149 = vmatpush1.msra.mxu0 0.0
  %150 = vmatprep.subr.mxu0 0.0
  %151 = vmatpush1.msra.mxu0 0.0
  %152 = vmatprep.subr.mxu0 0.0
  %153 = vmatpush1.msra.mxu0 0.0
  %154 = vmatprep.subr.mxu0 0.0
  %155 = vmatpush1.msra.mxu0 0.0
  %156 = vmatprep.subr.mxu0 0.0
  %157 = vmatpush1.msra.mxu0 0.0
  %158 = vmatprep.subr.mxu0 0.0
  %159 = vmatpush1.msra.mxu0 0.0
  %160 = vmatprep.subr.mxu0 0.0
  %161 = vmatpush1.msra.mxu0 0.0
  %162 = vmatprep.subr.mxu0 0.0
  %163 = vmatpush1.msra.mxu0 0.0
  %164 = vmatprep.subr.mxu0 0.0
  %165 = vmatpush1.msra.mxu0 0.0
  %166 = vmatprep.subr.mxu0 0.0
  %167 = vmatpush1.msra.mxu0 0.0
  %168 = vmatprep.subr.mxu0 0.0
  %169 = vmatpush1.msra.mxu0 0.0
  %170 = vmatprep.subr.mxu0 0.0
  %171 = vmatpush1.msra.mxu0 %v17
  %172 = vmatprep.subr.mxu0 0.0
  %173 = vmatpush1.msra.mxu0 %v16
  %174 = vmatprep.subr.mxu0 0.0
  %175 = vmatpush2.msra.mxu0 0.0
  %176 = vmatprep.subr.mxu0 0.0
  %177 = vmatpush2.msra.mxu0 0.0
  %178 = vmatprep.subr.mxu0 0.0
  %179 = vmatpush2.msra.mxu0 0.0
  %180 = vmatprep.subr.mxu0 0.0
  %181 = vmatpush2.msra.mxu0 0.0
  %182 = vmatprep.subr.mxu0 0.0
  %183 = vmatpush2.msra.mxu0 0.0
  %184 = vmatprep.subr.mxu0 0.0
  %185 = vmatpush2.msra.mxu0 0.0
  %186 = vmatprep.subr.mxu0 0.0
  %187 = vmatpush2.msra.mxu0 0.0
  %188 = vmatprep.subr.mxu0 0.0
  %189 = vmatpush2.msra.mxu0 0.0
  %190 = vmatprep.subr.mxu0 0.0
  %191 = vmatpush2.msra.mxu0 0.0
  %192 = vmatprep.subr.mxu0 0.0
  %193 = vmatpush2.msra.mxu0 0.0
  %194 = vmatprep.subr.mxu0 0.0
  %195 = vmatpush2.msra.mxu0 0.0
  %196 = vmatprep.subr.mxu0 0.0
  %197 = vmatpush2.msra.mxu0 0.0
  %198 = vmatprep.subr.mxu0 0.0
  %199 = vmatpush2.msra.mxu0 0.0
  %200 = vmatprep.subr.mxu0 0.0
  %201 = vmatpush2.msra.mxu0 0.0
  %202 = vmatprep.subr.mxu0 0.0
  %203 = vmatpush2.msra.mxu0 0.0
  %204 = vmatprep.subr.mxu0 0.0
  %205 = vmatpush2.msra.mxu0 0.0
  %206 = vmatprep.mubr.f32.mxu0 0.0
  %207 = vmatmul.mubr.f32.gmra.mxu0 %v140
  %v208 = vpop.f32.mrf.mxu0
  %v209 = vadd.f32 0.0, %v208
  %v210 = vpop.f32.mrf.mxu0
  %211 = vdwg.mxu0
  %v212 = vadd.f32 %v116, %v209
  %v213 = vxor.u32 %v212, 2147483648
  %v214 = vmul.f32 %v213, 1.442695
  %v215 = vpow.pop %v214
  %v216 = vadd.f32 %v215, 1.0
  %v217 = vrcp.pop %v216
  %v218 = vmul.f32 1.0, %v217
  %v219 = vadd.f32 %v209, %v23
  %221 = vrot.lane.b32.xlu0 %v219, 96
  %v222 = vpop.permute.xlu0 %221
  %v224 = vmul.f32 %v218, %v222
  %226 = vrot.lane.b32.xlu0 %v224, 32
  %v227 = vpop.permute.xlu0 %226
  %v229 = vadd.f32 %v116, %v227
  %v230 = vtanh.pop %v229
  %v231 = vsub.f32 0.0, %v230
  %233 = vrot.lane.b32.xlu0 %v231, 112
  %v234 = vpop.permute.xlu0 %233
  %v236 = vmul.f32 %v218, %v234
  %238 = vrot.lane.b32.xlu0 %v236, 16
  %v239 = vpop.permute.xlu0 %238
  %v241 = vadd.f32 %v230, %v239
  %243 = vrot.lane.b32.xlu0 %v241, 96
  %v244 = vpop.permute.xlu0 %243
  %v245 = vsel %vm33, %v244, 0
  %247 = vmatprep.subr.mxu0 0.0
  %248 = vmatpush1.msra.mxu0 0.0
  %249 = vmatprep.subr.mxu0 0.0
  %250 = vmatpush1.msra.mxu0 0.0
  %251 = vmatprep.subr.mxu0 0.0
  %252 = vmatpush1.msra.mxu0 0.0
  %253 = vmatprep.subr.mxu0 0.0
  %254 = vmatpush1.msra.mxu0 0.0
  %255 = vmatprep.subr.mxu0 0.0
  %256 = vmatpush1.msra.mxu0 0.0
  %257 = vmatprep.subr.mxu0 0.0
  %258 = vmatpush1.msra.mxu0 0.0
  %259 = vmatprep.subr.mxu0 0.0
  %260 = vmatpush1.msra.mxu0 0.0
  %261 = vmatprep.subr.mxu0 0.0
  %262 = vmatpush1.msra.mxu0 0.0
  %263 = vmatprep.subr.mxu0 0.0
  %264 = vmatpush1.msra.mxu0 0.0
  %265 = vmatprep.subr.mxu0 0.0
  %266 = vmatpush1.msra.mxu0 0.0
  %267 = vmatprep.subr.mxu0 0.0
  %268 = vmatpush1.msra.mxu0 0.0
  %269 = vmatprep.subr.mxu0 0.0
  %270 = vmatpush1.msra.mxu0 0.0
  %271 = vmatprep.subr.mxu0 0.0
  %272 = vmatpush1.msra.mxu0 0.0
  %273 = vmatprep.subr.mxu0 0.0
  %274 = vmatpush1.msra.mxu0 0.0
  %275 = vmatprep.subr.mxu0 0.0
  %276 = vmatpush1.msra.mxu0 %v17
  %277 = vmatprep.subr.mxu0 0.0
  %278 = vmatpush1.msra.mxu0 %v16
  %279 = vmatprep.subr.mxu0 0.0
  %280 = vmatpush2.msra.mxu0 0.0
  %281 = vmatprep.subr.mxu0 0.0
  %282 = vmatpush2.msra.mxu0 0.0
  %283 = vmatprep.subr.mxu0 0.0
  %284 = vmatpush2.msra.mxu0 0.0
  %285 = vmatprep.subr.mxu0 0.0
  %286 = vmatpush2.msra.mxu0 0.0
  %287 = vmatprep.subr.mxu0 0.0
  %288 = vmatpush2.msra.mxu0 0.0
  %289 = vmatprep.subr.mxu0 0.0
  %290 = vmatpush2.msra.mxu0 0.0
  %291 = vmatprep.subr.mxu0 0.0
  %292 = vmatpush2.msra.mxu0 0.0
  %293 = vmatprep.subr.mxu0 0.0
  %294 = vmatpush2.msra.mxu0 0.0
  %295 = vmatprep.subr.mxu0 0.0
  %296 = vmatpush2.msra.mxu0 0.0
  %297 = vmatprep.subr.mxu0 0.0
  %298 = vmatpush2.msra.mxu0 0.0
  %299 = vmatprep.subr.mxu0 0.0
  %300 = vmatpush2.msra.mxu0 0.0
  %301 = vmatprep.subr.mxu0 0.0
  %302 = vmatpush2.msra.mxu0 0.0
  %303 = vmatprep.subr.mxu0 0.0
  %304 = vmatpush2.msra.mxu0 0.0
  %305 = vmatprep.subr.mxu0 0.0
  %306 = vmatpush2.msra.mxu0 0.0
  %307 = vmatprep.subr.mxu0 0.0
  %308 = vmatpush2.msra.mxu0 0.0
  %309 = vmatprep.subr.mxu0 0.0
  %310 = vmatpush2.msra.mxu0 0.0
  %311 = vmatprep.mubr.f32.mxu0 0.0
  %312 = vmatmul.mubr.f32.gmra.mxu0 %v245
  %v313 = vpop.f32.mrf.mxu0
  %v314 = vadd.f32 0.0, %v313
  %v315 = vpop.f32.mrf.mxu0
  %316 = vdwg.mxu0
  %v317 = vadd.f32 %v121, %v314
  %v318 = vxor.u32 %v317, 2147483648
  %v319 = vmul.f32 %v318, 1.442695
  %v320 = vpow.pop %v319
  %v321 = vadd.f32 %v320, 1.0
  %v322 = vrcp.pop %v321
  %v323 = vmul.f32 1.0, %v322
  %v324 = vadd.f32 %v314, %v23
  %326 = vrot.lane.b32.xlu0 %v324, 96
  %v327 = vpop.permute.xlu0 %326
  %v329 = vmul.f32 %v323, %v327
  %331 = vrot.lane.b32.xlu0 %v329, 32
  %v332 = vpop.permute.xlu0 %331
  %v334 = vadd.f32 %v121, %v332
  %v335 = vtanh.pop %v334
  %v336 = vsub.f32 %v241, %v335
  %338 = vrot.lane.b32.xlu0 %v336, 112
  %v339 = vpop.permute.xlu0 %338
  %v341 = vmul.f32 %v323, %v339
  %343 = vrot.lane.b32.xlu0 %v341, 16
  %v344 = vpop.permute.xlu0 %343
  %v346 = vadd.f32 %v335, %v344
  %348 = vrot.lane.b32.xlu0 %v346, 96
  %v349 = vpop.permute.xlu0 %348
  %v350 = vsel %vm33, %v349, 0
  %352 = vmatprep.subr.mxu0 0.0
  %353 = vmatpush1.msra.mxu0 0.0
  %354 = vmatprep.subr.mxu0 0.0
  %355 = vmatpush1.msra.mxu0 0.0
  %356 = vmatprep.subr.mxu0 0.0
  %357 = vmatpush1.msra.mxu0 0.0
  %358 = vmatprep.subr.mxu0 0.0
  %359 = vmatpush1.msra.mxu0 0.0
  %360 = vmatprep.subr.mxu0 0.0
  %361 = vmatpush1.msra.mxu0 0.0
  %362 = vmatprep.subr.mxu0 0.0
  %363 = vmatpush1.msra.mxu0 0.0
  %364 = vmatprep.subr.mxu0 0.0
  %365 = vmatpush1.msra.mxu0 0.0
  %366 = vmatprep.subr.mxu0 0.0
  %367 = vmatpush1.msra.mxu0 0.0
  %368 = vmatprep.subr.mxu0 0.0
  %369 = vmatpush1.msra.mxu0 0.0
  %370 = vmatprep.subr.mxu0 0.0
  %371 = vmatpush1.msra.mxu0 0.0
  %372 = vmatprep.subr.mxu0 0.0
  %373 = vmatpush1.msra.mxu0 0.0
  %374 = vmatprep.subr.mxu0 0.0
  %375 = vmatpush1.msra.mxu0 0.0
  %376 = vmatprep.subr.mxu0 0.0
  %377 = vmatpush1.msra.mxu0 0.0
  %378 = vmatprep.subr.mxu0 0.0
  %379 = vmatpush1.msra.mxu0 0.0
  %380 = vmatprep.subr.mxu0 0.0
  %381 = vmatpush1.msra.mxu0 %v17
  %382 = vmatprep.subr.mxu0 0.0
  %383 = vmatpush1.msra.mxu0 %v16
  %384 = vmatprep.subr.mxu0 0.0
  %385 = vmatpush2.msra.mxu0 0.0
  %386 = vmatprep.subr.mxu0 0.0
  %387 = vmatpush2.msra.mxu0 0.0
  %388 = vmatprep.subr.mxu0 0.0
  %389 = vmatpush2.msra.mxu0 0.0
  %390 = vmatprep.subr.mxu0 0.0
  %391 = vmatpush2.msra.mxu0 0.0
  %392 = vmatprep.subr.mxu0 0.0
  %393 = vmatpush2.msra.mxu0 0.0
  %394 = vmatprep.subr.mxu0 0.0
  %395 = vmatpush2.msra.mxu0 0.0
  %396 = vmatprep.subr.mxu0 0.0
  %397 = vmatpush2.msra.mxu0 0.0
  %398 = vmatprep.subr.mxu0 0.0
  %399 = vmatpush2.msra.mxu0 0.0
  %400 = vmatprep.subr.mxu0 0.0
  %401 = vmatpush2.msra.mxu0 0.0
  %402 = vmatprep.subr.mxu0 0.0
  %403 = vmatpush2.msra.mxu0 0.0
  %404 = vmatprep.subr.mxu0 0.0
  %405 = vmatpush2.msra.mxu0 0.0
  %406 = vmatprep.subr.mxu0 0.0
  %407 = vmatpush2.msra.mxu0 0.0
  %408 = vmatprep.subr.mxu0 0.0
  %409 = vmatpush2.msra.mxu0 0.0
  %410 = vmatprep.subr.mxu0 0.0
  %411 = vmatpush2.msra.mxu0 0.0
  %412 = vmatprep.subr.mxu0 0.0
  %413 = vmatpush2.msra.mxu0 0.0
  %414 = vmatprep.subr.mxu0 0.0
  %415 = vmatpush2.msra.mxu0 0.0
  %416 = vmatprep.mubr.f32.mxu0 0.0
  %417 = vmatmul.mubr.f32.gmra.mxu0 %v350
  %v418 = vpop.f32.mrf.mxu0
  %v419 = vadd.f32 0.0, %v418
  %v420 = vpop.f32.mrf.mxu0
  %421 = vdwg.mxu0
  %v422 = vadd.f32 %v126, %v419
  %v423 = vxor.u32 %v422, 2147483648
  %v424 = vmul.f32 %v423, 1.442695
  %v425 = vpow.pop %v424
  %v426 = vadd.f32 %v425, 1.0
  %v427 = vrcp.pop %v426
  %v428 = vmul.f32 1.0, %v427
  %v429 = vadd.f32 %v419, %v23
  %431 = vrot.lane.b32.xlu0 %v429, 96
  %v432 = vpop.permute.xlu0 %431
  %v434 = vmul.f32 %v428, %v432
  %436 = vrot.lane.b32.xlu0 %v434, 32
  %v437 = vpop.permute.xlu0 %436
  %v439 = vadd.f32 %v126, %v437
  %v440 = vtanh.pop %v439
  %v441 = vsub.f32 %v346, %v440
  %443 = vrot.lane.b32.xlu0 %v441, 112
  %v444 = vpop.permute.xlu0 %443
  %v446 = vmul.f32 %v428, %v444
  %448 = vrot.lane.b32.xlu0 %v446, 16
  %v449 = vpop.permute.xlu0 %448
  %v451 = vadd.f32 %v440, %v449
  %453 = vrot.lane.b32.xlu0 %v451, 96
  %v454 = vpop.permute.xlu0 %453
  %v455 = vsel %vm33, %v454, 0
  %457 = vmatprep.subr.mxu0 0.0
  %458 = vmatpush1.msra.mxu0 0.0
  %459 = vmatprep.subr.mxu0 0.0
  %460 = vmatpush1.msra.mxu0 0.0
  %461 = vmatprep.subr.mxu0 0.0
  %462 = vmatpush1.msra.mxu0 0.0
  %463 = vmatprep.subr.mxu0 0.0
  %464 = vmatpush1.msra.mxu0 0.0
  %465 = vmatprep.subr.mxu0 0.0
  %466 = vmatpush1.msra.mxu0 0.0
  %467 = vmatprep.subr.mxu0 0.0
  %468 = vmatpush1.msra.mxu0 0.0
  %469 = vmatprep.subr.mxu0 0.0
  %470 = vmatpush1.msra.mxu0 0.0
  %471 = vmatprep.subr.mxu0 0.0
  %472 = vmatpush1.msra.mxu0 0.0
  %473 = vmatprep.subr.mxu0 0.0
  %474 = vmatpush1.msra.mxu0 0.0
  %475 = vmatprep.subr.mxu0 0.0
  %476 = vmatpush1.msra.mxu0 0.0
  %477 = vmatprep.subr.mxu0 0.0
  %478 = vmatpush1.msra.mxu0 0.0
  %479 = vmatprep.subr.mxu0 0.0
  %480 = vmatpush1.msra.mxu0 0.0
  %481 = vmatprep.subr.mxu0 0.0
  %482 = vmatpush1.msra.mxu0 0.0
  %483 = vmatprep.subr.mxu0 0.0
  %484 = vmatpush1.msra.mxu0 0.0
  %485 = vmatprep.subr.mxu0 0.0
  %486 = vmatpush1.msra.mxu0 %v17
  %487 = vmatprep.subr.mxu0 0.0
  %488 = vmatpush1.msra.mxu0 %v16
  %489 = vmatprep.subr.mxu0 0.0
  %490 = vmatpush2.msra.mxu0 0.0
  %491 = vmatprep.subr.mxu0 0.0
  %492 = vmatpush2.msra.mxu0 0.0
  %493 = vmatprep.subr.mxu0 0.0
  %494 = vmatpush2.msra.mxu0 0.0
  %495 = vmatprep.subr.mxu0 0.0
  %496 = vmatpush2.msra.mxu0 0.0
  %497 = vmatprep.subr.mxu0 0.0
  %498 = vmatpush2.msra.mxu0 0.0
  %499 = vmatprep.subr.mxu0 0.0
  %500 = vmatpush2.msra.mxu0 0.0
  %501 = vmatprep.subr.mxu0 0.0
  %502 = vmatpush2.msra.mxu0 0.0
  %503 = vmatprep.subr.mxu0 0.0
  %504 = vmatpush2.msra.mxu0 0.0
  %505 = vmatprep.subr.mxu0 0.0
  %506 = vmatpush2.msra.mxu0 0.0
  %507 = vmatprep.subr.mxu0 0.0
  %508 = vmatpush2.msra.mxu0 0.0
  %509 = vmatprep.subr.mxu0 0.0
  %510 = vmatpush2.msra.mxu0 0.0
  %511 = vmatprep.subr.mxu0 0.0
  %512 = vmatpush2.msra.mxu0 0.0
  %513 = vmatprep.subr.mxu0 0.0
  %514 = vmatpush2.msra.mxu0 0.0
  %515 = vmatprep.subr.mxu0 0.0
  %516 = vmatpush2.msra.mxu0 0.0
  %517 = vmatprep.subr.mxu0 0.0
  %518 = vmatpush2.msra.mxu0 0.0
  %519 = vmatprep.subr.mxu0 0.0
  %520 = vmatpush2.msra.mxu0 0.0
  %521 = vmatprep.mubr.f32.mxu0 0.0
  %522 = vmatmul.mubr.f32.gmra.mxu0 %v455
  %v523 = vpop.f32.mrf.mxu0
  %v524 = vadd.f32 0.0, %v523
  %v525 = vpop.f32.mrf.mxu0
  %526 = vdwg.mxu0
  %v527 = vadd.f32 %v131, %v524
  %v528 = vxor.u32 %v527, 2147483648
  %v529 = vmul.f32 %v528, 1.442695
  %v530 = vpow.pop %v529
  %v531 = vadd.f32 %v530, 1.0
  %v532 = vrcp.pop %v531
  %v533 = vmul.f32 1.0, %v532
  %v534 = vadd.f32 %v524, %v23
  %536 = vrot.lane.b32.xlu0 %v534, 96
  %v537 = vpop.permute.xlu0 %536
  %v539 = vmul.f32 %v533, %v537
  %541 = vrot.lane.b32.xlu0 %v539, 32
  %v542 = vpop.permute.xlu0 %541
  %v544 = vadd.f32 %v131, %v542
  %v545 = vtanh.pop %v544
  %v546 = vsub.f32 %v451, %v545
  %548 = vrot.lane.b32.xlu0 %v546, 112
  %v549 = vpop.permute.xlu0 %548
  %v551 = vmul.f32 %v533, %v549
  %553 = vrot.lane.b32.xlu0 %v551, 16
  %v554 = vpop.permute.xlu0 %553
  %v556 = vadd.f32 %v545, %v554
  %558 = vrot.lane.b32.xlu0 %v556, 96
  %v559 = vpop.permute.xlu0 %558
  %v560 = vsel %vm33, %v559, 0
  %562 = vmatprep.subr.mxu0 0.0
  %563 = vmatpush1.msra.mxu0 0.0
  %564 = vmatprep.subr.mxu0 0.0
  %565 = vmatpush1.msra.mxu0 0.0
  %566 = vmatprep.subr.mxu0 0.0
  %567 = vmatpush1.msra.mxu0 0.0
  %568 = vmatprep.subr.mxu0 0.0
  %569 = vmatpush1.msra.mxu0 0.0
  %570 = vmatprep.subr.mxu0 0.0
  %571 = vmatpush1.msra.mxu0 0.0
  %572 = vmatprep.subr.mxu0 0.0
  %573 = vmatpush1.msra.mxu0 0.0
  %574 = vmatprep.subr.mxu0 0.0
  %575 = vmatpush1.msra.mxu0 0.0
  %576 = vmatprep.subr.mxu0 0.0
  %577 = vmatpush1.msra.mxu0 0.0
  %578 = vmatprep.subr.mxu0 0.0
  %579 = vmatpush1.msra.mxu0 0.0
  %580 = vmatprep.subr.mxu0 0.0
  %581 = vmatpush1.msra.mxu0 0.0
  %582 = vmatprep.subr.mxu0 0.0
  %583 = vmatpush1.msra.mxu0 0.0
  %584 = vmatprep.subr.mxu0 0.0
  %585 = vmatpush1.msra.mxu0 0.0
  %586 = vmatprep.subr.mxu0 0.0
  %587 = vmatpush1.msra.mxu0 0.0
  %588 = vmatprep.subr.mxu0 0.0
  %589 = vmatpush1.msra.mxu0 0.0
  %590 = vmatprep.subr.mxu0 0.0
  %591 = vmatpush1.msra.mxu0 %v17
  %592 = vmatprep.subr.mxu0 0.0
  %593 = vmatpush1.msra.mxu0 %v16
  %594 = vmatprep.subr.mxu0 0.0
  %595 = vmatpush2.msra.mxu0 0.0
  %596 = vmatprep.subr.mxu0 0.0
  %597 = vmatpush2.msra.mxu0 0.0
  %598 = vmatprep.subr.mxu0 0.0
  %599 = vmatpush2.msra.mxu0 0.0
  %600 = vmatprep.subr.mxu0 0.0
  %601 = vmatpush2.msra.mxu0 0.0
  %602 = vmatprep.subr.mxu0 0.0
  %603 = vmatpush2.msra.mxu0 0.0
  %604 = vmatprep.subr.mxu0 0.0
  %605 = vmatpush2.msra.mxu0 0.0
  %606 = vmatprep.subr.mxu0 0.0
  %607 = vmatpush2.msra.mxu0 0.0
  %608 = vmatprep.subr.mxu0 0.0
  %609 = vmatpush2.msra.mxu0 0.0
  %610 = vmatprep.subr.mxu0 0.0
  %611 = vmatpush2.msra.mxu0 0.0
  %612 = vmatprep.subr.mxu0 0.0
  %613 = vmatpush2.msra.mxu0 0.0
  %614 = vmatprep.subr.mxu0 0.0
  %615 = vmatpush2.msra.mxu0 0.0
  %616 = vmatprep.subr.mxu0 0.0
  %617 = vmatpush2.msra.mxu0 0.0
  %618 = vmatprep.subr.mxu0 0.0
  %619 = vmatpush2.msra.mxu0 0.0
  %620 = vmatprep.subr.mxu0 0.0
  %621 = vmatpush2.msra.mxu0 0.0
  %622 = vmatprep.subr.mxu0 0.0
  %623 = vmatpush2.msra.mxu0 0.0
  %624 = vmatprep.subr.mxu0 0.0
  %625 = vmatpush2.msra.mxu0 0.0
  %626 = vmatprep.mubr.f32.mxu0 0.0
  %627 = vmatmul.mubr.f32.gmra.mxu0 %v560
  %v628 = vpop.f32.mrf.mxu0
  %v629 = vadd.f32 0.0, %v628
  %v630 = vpop.f32.mrf.mxu0
  %631 = vdwg.mxu0
  %v632 = vadd.f32 %v136, %v629
  %v633 = vxor.u32 %v632, 2147483648
  %v634 = vmul.f32 %v633, 1.442695
  %v635 = vpow.pop %v634
  %v636 = vadd.f32 %v635, 1.0
  %v637 = vrcp.pop %v636
  %v638 = vmul.f32 1.0, %v637
  %v639 = vadd.f32 %v629, %v23
  %641 = vrot.lane.b32.xlu0 %v639, 96
  %v642 = vpop.permute.xlu0 %641
  %v644 = vmul.f32 %v638, %v642
  %646 = vrot.lane.b32.xlu0 %v644, 32
  %v647 = vpop.permute.xlu0 %646
  %v649 = vadd.f32 %v136, %v647
  %v650 = vtanh.pop %v649
  %v651 = vsub.f32 %v556, %v650
  %653 = vrot.lane.b32.xlu0 %v651, 112
  %v654 = vpop.permute.xlu0 %653
  %v656 = vmul.f32 %v638, %v654
  %658 = vrot.lane.b32.xlu0 %v656, 16
  %v659 = vpop.permute.xlu0 %658
  %v661 = vadd.f32 %v650, %v659
  %663 = vrot.lane.b32.xlu0 %v661, 96
  %v664 = vpop.permute.xlu0 %663
  %666 = vst.msk [vmem:[%s3] sm:$0xff] %vm33, %v664
  // Predicated region
  $region14: #{firstnet_forward.1} parent=0 // pred_check
    _
  $region15: #{firstnet_forward.1} parent=0 // pred_check_branch
    %668 = sbr.rel (0) target = $region17
  $region16: #{firstnet_forward.1} parent=0 // pred_region
    _
  $region17: #{firstnet_forward.1} parent=0 // pred_fallthru
    _
  // Predicated region
  $region18: #{firstnet_forward.1} parent=0 // pred_check
    _
  $region19: #{firstnet_forward.1} parent=0 // pred_check_branch
    %670 = sbr.rel (0) target = $region21
  $region20: #{firstnet_forward.1} parent=0 // pred_region
    _
  $region21: #{firstnet_forward.1} parent=0 // pred_fallthru
    _

</llo_original>
